<compile_context>
chip_gen: v6e
topology: v6e:2x2x1
jax: 0.10.0
libtpu: 0.0.40
codegen_flags: <defaults>
</compile_context>

<pallas_src>
import math

import jax
import jax.numpy as jnp
from jax import lax
from jax.experimental import pallas as pl
from jax.experimental.pallas import tpu as pltpu

HIDDEN = 64  # fixed by the module definition
_LOG_2PI = math.log(2.0 * math.pi)
_LOG_2 = math.log(2.0)


def _round_up(n, m):
    return ((n + m - 1) // m) * m


def _make_kernel(dim_act, a_pad, tb):
    """Build the kernel closed over static head sizes / lane-tile width."""

    def kernel(xT_ref, w1_ref, b1_ref, w2_ref, b2_ref, out_ref):
        xT = xT_ref[...]                                            # [S, TB]

        # ---- layer 1 (MXU), batch on lanes ----
        h = jnp.dot(w1_ref[...], xT, preferred_element_type=jnp.float32)
        h = jnp.maximum(h + b1_ref[...], 0.0)                       # [64, TB]

        # ---- fused mu / log_std heads: one MXU push, free sublane split ----
        out2 = jnp.dot(w2_ref[...], h, preferred_element_type=jnp.float32)
        out2 = out2 + b2_ref[...]                                   # [2*a_pad, TB]
        mu = out2[:a_pad]                                           # [a_pad, TB]
        log_std = jnp.clip(out2[a_pad:], -5.0, 2.0)
        std = jnp.exp(log_std)

        # ---- tanh + tanh-Normal log-prob sharing t = exp(-2|mu|) ----
        #   action  = tanh(mu) = sign(mu) * (1 - t) / (1 + t)
        #   logprob = -log_std - 0.5*log(2*pi)            (pre-tanh value == mu)
        #             - 2*(log 2 - |mu| - log1p(t))       (stable tanh log-det)
        # (Avoids atanh(tanh(mu)), which overflows when f32 tanh saturates.)
        abs_mu = jnp.abs(mu)
        t = jnp.exp(-2.0 * abs_mu)
        inv = pl.reciprocal(1.0 + t, approx=True)                   # EUP vrcp
        sgn = jnp.where(mu >= 0.0, 1.0, -1.0)
        action = sgn * (1.0 - t) * inv
        # log(1+t) instead of log1p(t): t <= 1 so the accuracy difference is
        # negligible, and jnp.log is guaranteed to lower on Mosaic.
        lp = (-log_std - 0.5 * _LOG_2PI
              - 2.0 * (_LOG_2 - abs_mu - jnp.log(1.0 + t)))         # [a_pad, TB]
        if a_pad != dim_act:  # mask zero-padded head rows out of the sum
            row = lax.broadcasted_iota(jnp.int32, (a_pad, 1), 0)
            lp = jnp.where(row < dim_act, lp, 0.0)
        lp_sum = jnp.sum(lp, axis=0, keepdims=True)                 # [1, TB]

        # ---- packed, lane-dense writeback: [action | mu | std | lp(x8)] ----
        out_ref[0:a_pad, :] = action
        out_ref[a_pad:2 * a_pad, :] = mu
        out_ref[2 * a_pad:3 * a_pad, :] = std
        out_ref[3 * a_pad:3 * a_pad + 8, :] = jnp.broadcast_to(lp_sum, (8, tb))

    return kernel


def oac_actor_forward(x, params, tile_batch=2048):
    """x: [B, dim_state] float32.  params in torch Linear layout ([out, in],
    biases [out, 1]).  Returns a dict like the torch module; the 'dist'
    TransformedDistribution is represented by its parameters (mu, std)."""
    w1, b1, w2_mu, b2_mu, w2_ls, b2_ls = params
    b, dim_state = x.shape
    dim_act = w2_mu.shape[0]
    a_pad = _round_up(dim_act, 8)
    slab_rows = 3 * a_pad + 8

    # Fused, sublane-padded head weight/bias: [mu rows ; log_std rows].
    def pad_rows(m):
        return jnp.pad(m, ((0, a_pad - dim_act), (0, 0)))

    w2c = jnp.concatenate([pad_rows(w2_mu), pad_rows(w2_ls)], axis=0)   # [2*a_pad, 64]
    b2c = jnp.concatenate([pad_rows(b2_mu), pad_rows(b2_ls)], axis=0)   # [2*a_pad, 1]

    # Batch tiling: lane axis, multiple of 128, minimal padding; >=2 steps for
    # larger batches so "parallel" can shard across both v7x TensorCores.
    n_steps = max(1, pl.cdiv(b, tile_batch))
    if n_steps == 1 and b > 128:
        n_steps = 2
    tb = _round_up(pl.cdiv(b, n_steps), 128)
    bp = n_steps * tb
    xT = jnp.pad(x, ((0, bp - b), (0, 0))).T                            # [S, bp]

    def resident(arr):
        # full-array block, constant index -> stays in VMEM across grid steps
        return pl.BlockSpec(arr.shape, lambda i: (0, 0))

    cost = pl.CostEstimate(
        flops=2 * bp * (dim_state * HIDDEN + HIDDEN * 2 * a_pad) + 16 * bp * a_pad,
        transcendentals=4 * bp * a_pad,
        bytes_accessed=4 * (bp * (dim_state + slab_rows)
                            + HIDDEN * (dim_state + 1)
                            + 2 * a_pad * (HIDDEN + 1)),
    )

    packed = pl.pallas_call(
        _make_kernel(dim_act, a_pad, tb),
        out_shape=jax.ShapeDtypeStruct((slab_rows, bp), jnp.float32),
        grid=(n_steps,),
        in_specs=[
            pl.BlockSpec((dim_state, tb), lambda i: (0, i)),   # xT tiled over batch lanes
            resident(w1), resident(b1), resident(w2c), resident(b2c),
        ],
        out_specs=pl.BlockSpec((slab_rows, tb), lambda i: (0, i)),
        compiler_params=pltpu.CompilerParams(
            dimension_semantics=("parallel",)),                # 2 TCs on v7x
        cost_estimate=cost,
    )(xT, w1, b1, w2c, b2c)

    packed = packed[:, :b]
    action = packed[0:dim_act].T
    mu = packed[a_pad:a_pad + dim_act].T
    std = packed[2 * a_pad:2 * a_pad + dim_act].T
    logprob = packed[3 * a_pad:3 * a_pad + 1].T

    # TODO(synk): torch returns a TransformedDistribution object under 'dist'
    # and an rsample() path when is_training=True (needs in-kernel PRNG); we
    # expose the distribution parameters and the deterministic eval action.
    return {
        "action": action,
        "dist": {"mu": mu, "std": std},
        "action_logprob": logprob,
    }


def init_params(key, dim_state, dim_act):
    """torch.nn.Linear default init (U(-k, k), k = 1/sqrt(fan_in)), torch
    layout: weights [out, in], biases [out, 1].  The second Linear is split
    into its mu (first dim_act rows) and log_std (last dim_act rows) heads."""
    k1, k2, k3, k4, k5, k6 = jax.random.split(key, 6)
    bound1 = 1.0 / math.sqrt(dim_state)
    bound2 = 1.0 / math.sqrt(HIDDEN)
    w1 = jax.random.uniform(k1, (HIDDEN, dim_state), jnp.float32, -bound1, bound1)
    b1 = jax.random.uniform(k2, (HIDDEN, 1), jnp.float32, -bound1, bound1)
    w2_mu = jax.random.uniform(k3, (dim_act, HIDDEN), jnp.float32, -bound2, bound2)
    b2_mu = jax.random.uniform(k4, (dim_act, 1), jnp.float32, -bound2, bound2)
    w2_ls = jax.random.uniform(k5, (dim_act, HIDDEN), jnp.float32, -bound2, bound2)
    b2_ls = jax.random.uniform(k6, (dim_act, 1), jnp.float32, -bound2, bound2)
    return w1, b1, w2_mu, b2_mu, w2_ls, b2_ls


def _reference(x, params):
    """Pure-JAX reference following the literal torch formulation."""
    w1, b1, w2_mu, b2_mu, w2_ls, b2_ls = params
    h = jnp.maximum(x @ w1.T + b1.T, 0.0)
    mu = h @ w2_mu.T + b2_mu.T
    log_std = jnp.clip(h @ w2_ls.T + b2_ls.T, -5.0, 2.0)
    std = jnp.exp(log_std)
    action = jnp.tanh(mu)
    x_pre = jnp.arctanh(action)
    normal_lp = -0.5 * ((x_pre - mu) / std) ** 2 - log_std - 0.5 * _LOG_2PI
    log_det = 2.0 * (_LOG_2 - x_pre - jax.nn.softplus(-2.0 * x_pre))
    lp = jnp.sum(normal_lp - log_det, axis=-1, keepdims=True)
    return action, mu, std, lp


if __name__ == "__main__":
    dim_state, dim_act, batch = 32, 8, 4

    key = jax.random.PRNGKey(0)
    k_params, k_x = jax.random.split(key)
    params = init_params(k_params, dim_state, dim_act)
    x = jax.random.normal(k_x, (batch, dim_state), dtype=jnp.float32)

    out = oac_actor_forward(x, params)
    jax.block_until_ready(out)

    assert out["action"].shape == (batch, dim_act)
    assert out["dist"]["mu"].shape == (batch, dim_act)
    assert out["dist"]["std"].shape == (batch, dim_act)
    assert out["action_logprob"].shape == (batch, 1)

    ref_action, ref_mu, ref_std, ref_lp = _reference(x, params)
    assert jnp.allclose(out["dist"]["mu"], ref_mu, atol=1e-4, rtol=1e-4)
    assert jnp.allclose(out["dist"]["std"], ref_std, atol=1e-4, rtol=1e-4)
    # tanh uses the shared-exp identity + approx reciprocal -> slightly looser.
    assert jnp.allclose(out["action"], ref_action, atol=2e-3, rtol=2e-3)
    assert jnp.allclose(out["action_logprob"], ref_lp, atol=5e-3, rtol=5e-3)

    print("KERNEL_OK")
</pallas_src>

<mosaic_0001>
module attributes {stable_mosaic.version = 11 : i64} {
  func.func @kernel(%arg0: i32, %arg1: memref<32x128xf32, #tpu.memory_space<vmem>>, %arg2: memref<64x32xf32, #tpu.memory_space<vmem>>, %arg3: memref<64x1xf32, #tpu.memory_space<vmem>>, %arg4: memref<16x64xf32, #tpu.memory_space<vmem>>, %arg5: memref<16x1xf32, #tpu.memory_space<vmem>>, %arg6: memref<32x128xf32, #tpu.memory_space<vmem>>) attributes {dimension_semantics = [#tpu.dimension_semantics<parallel>], iteration_bounds = array<i64: 1>, scalar_prefetch = 0 : i64, scratch_operands = 0 : i64, tpu.core_type = #tpu.core_type<tc>, window_params = [{transform_indices = @transform_0, window_bounds = array<i64: 32, 128>}, {pipeline_mode = #tpu.pipeline_mode<synchronous>, transform_indices = @transform_1, window_bounds = array<i64: 64, 32>}, {pipeline_mode = #tpu.pipeline_mode<synchronous>, transform_indices = @transform_2, window_bounds = array<i64: 64, 1>}, {pipeline_mode = #tpu.pipeline_mode<synchronous>, transform_indices = @transform_3, window_bounds = array<i64: 16, 64>}, {pipeline_mode = #tpu.pipeline_mode<synchronous>, transform_indices = @transform_4, window_bounds = array<i64: 16, 1>}, {transform_indices = @transform_5, window_bounds = array<i64: 32, 128>}]} {
    %c0 = arith.constant 0 : index
    %c0_0 = arith.constant 0 : index
    %0 = vector.load %arg1[%c0, %c0_0] : memref<32x128xf32, #tpu.memory_space<vmem>>, vector<32x128xf32>
    %c0_1 = arith.constant 0 : index
    %c0_2 = arith.constant 0 : index
    %1 = vector.load %arg2[%c0_1, %c0_2] : memref<64x32xf32, #tpu.memory_space<vmem>>, vector<64x32xf32>
    %cst = arith.constant dense<0.000000e+00> : vector<64x128xf32>
    %2 = tpu.matmul %1, %0, %cst {dimension_numbers = #tpu.dot_dimension_numbers<[1], [0], [0], [1], [0, 0, 1, 1], [], []>} : vector<64x32xf32>, vector<32x128xf32>, vector<64x128xf32> -> vector<64x128xf32>
    %c0_3 = arith.constant 0 : index
    %c0_4 = arith.constant 0 : index
    %3 = vector.load %arg3[%c0_3, %c0_4] : memref<64x1xf32, #tpu.memory_space<vmem>>, vector<64x1xf32>
    %4 = vector.broadcast %3 : vector<64x1xf32> to vector<64x128xf32>
    %5 = arith.addf %2, %4 : vector<64x128xf32>
    %cst_5 = arith.constant 0.000000e+00 : f32
    %6 = vector.broadcast %cst_5 : f32 to vector<64x128xf32>
    %7 = arith.maximumf %5, %6 : vector<64x128xf32>
    %c0_6 = arith.constant 0 : index
    %c0_7 = arith.constant 0 : index
    %8 = vector.load %arg4[%c0_6, %c0_7] : memref<16x64xf32, #tpu.memory_space<vmem>>, vector<16x64xf32>
    %cst_8 = arith.constant dense<0.000000e+00> : vector<16x128xf32>
    %9 = tpu.matmul %8, %7, %cst_8 {dimension_numbers = #tpu.dot_dimension_numbers<[1], [0], [0], [1], [0, 0, 1, 1], [], []>} : vector<16x64xf32>, vector<64x128xf32>, vector<16x128xf32> -> vector<16x128xf32>
    %c0_9 = arith.constant 0 : index
    %c0_10 = arith.constant 0 : index
    %10 = vector.load %arg5[%c0_9, %c0_10] : memref<16x1xf32, #tpu.memory_space<vmem>>, vector<16x1xf32>
    %11 = vector.broadcast %10 : vector<16x1xf32> to vector<16x128xf32>
    %12 = arith.addf %9, %11 : vector<16x128xf32>
    %13 = vector.extract_strided_slice %12 {offsets = [0, 0], sizes = [8, 128], strides = [1, 1]} : vector<16x128xf32> to vector<8x128xf32>
    %14 = vector.extract_strided_slice %12 {offsets = [8, 0], sizes = [8, 128], strides = [1, 1]} : vector<16x128xf32> to vector<8x128xf32>
    %cst_11 = arith.constant -5.000000e+00 : f32
    %cst_12 = arith.constant 2.000000e+00 : f32
    %15 = vector.broadcast %cst_11 : f32 to vector<8x128xf32>
    %16 = arith.maximumf %15, %14 : vector<8x128xf32>
    %17 = vector.broadcast %cst_12 : f32 to vector<8x128xf32>
    %18 = arith.minimumf %17, %16 : vector<8x128xf32>
    %19 = math.exp %18 : vector<8x128xf32>
    %20 = math.absf %13 : vector<8x128xf32>
    %cst_13 = arith.constant -2.000000e+00 : f32
    %21 = vector.broadcast %cst_13 : f32 to vector<8x128xf32>
    %22 = arith.mulf %21, %20 : vector<8x128xf32>
    %23 = math.exp %22 : vector<8x128xf32>
    %cst_14 = arith.constant 1.000000e+00 : f32
    %24 = vector.broadcast %cst_14 : f32 to vector<8x128xf32>
    %25 = arith.addf %24, %23 : vector<8x128xf32>
    %26 = tpu.reciprocal %25 {approx = true} : vector<8x128xf32> -> vector<8x128xf32>
    %cst_15 = arith.constant 0.000000e+00 : f32
    %27 = vector.broadcast %cst_15 : f32 to vector<8x128xf32>
    %28 = arith.cmpf oge, %13, %27 : vector<8x128xf32>
    %cst_16 = arith.constant 1.000000e+00 : f32
    %cst_17 = arith.constant -1.000000e+00 : f32
    %29 = vector.broadcast %cst_16 : f32 to vector<8x128xf32>
    %30 = vector.broadcast %cst_17 : f32 to vector<8x128xf32>
    %31 = arith.select %28, %29, %30 : vector<8x128xi1>, vector<8x128xf32>
    %cst_18 = arith.constant 1.000000e+00 : f32
    %32 = vector.broadcast %cst_18 : f32 to vector<8x128xf32>
    %33 = arith.subf %32, %23 : vector<8x128xf32>
    %34 = arith.mulf %31, %33 : vector<8x128xf32>
    %35 = arith.mulf %34, %26 : vector<8x128xf32>
    %cst_19 = arith.constant 0.000000e+00 : f32
    %36 = vector.broadcast %cst_19 : f32 to vector<8x128xf32>
    %37 = arith.subf %36, %18 : vector<8x128xf32>
    %cst_20 = arith.constant 0.918938517 : f32
    %38 = vector.broadcast %cst_20 : f32 to vector<8x128xf32>
    %39 = arith.subf %37, %38 : vector<8x128xf32>
    %cst_21 = arith.constant 0.693147182 : f32
    %40 = vector.broadcast %cst_21 : f32 to vector<8x128xf32>
    %41 = arith.subf %40, %20 : vector<8x128xf32>
    %cst_22 = arith.constant 1.000000e+00 : f32
    %42 = vector.broadcast %cst_22 : f32 to vector<8x128xf32>
    %43 = arith.addf %42, %23 : vector<8x128xf32>
    %44 = math.log %43 : vector<8x128xf32>
    %45 = arith.subf %41, %44 : vector<8x128xf32>
    %cst_23 = arith.constant 2.000000e+00 : f32
    %46 = vector.broadcast %cst_23 : f32 to vector<8x128xf32>
    %47 = arith.mulf %46, %45 : vector<8x128xf32>
    %48 = arith.subf %39, %47 : vector<8x128xf32>
    %cst_24 = arith.constant dense<0.000000e+00> : vector<128xf32>
    %49 = vector.multi_reduction <add>, %48, %cst_24 [0] : vector<8x128xf32> to vector<128xf32>
    %50 = vector.shape_cast %49 : vector<128xf32> to vector<1x128xf32>
    %c0_25 = arith.constant 0 : index
    %c0_26 = arith.constant 0 : index
    %51 = vector.load %arg6[%c0_25, %c0_26] : memref<32x128xf32, #tpu.memory_space<vmem>>, vector<8x128xf32>
    tpu.vector_store %arg6[%c0_25, %c0_26], %35 {strides = array<i32>} : memref<32x128xf32, #tpu.memory_space<vmem>>, vector<8x128xf32>,
    %c8 = arith.constant 8 : index
    %c0_27 = arith.constant 0 : index
    %52 = vector.load %arg6[%c8, %c0_27] : memref<32x128xf32, #tpu.memory_space<vmem>>, vector<8x128xf32>
    tpu.vector_store %arg6[%c8, %c0_27], %13 {strides = array<i32>} : memref<32x128xf32, #tpu.memory_space<vmem>>, vector<8x128xf32>,
    %c16 = arith.constant 16 : index
    %c0_28 = arith.constant 0 : index
    %53 = vector.load %arg6[%c16, %c0_28] : memref<32x128xf32, #tpu.memory_space<vmem>>, vector<8x128xf32>
    tpu.vector_store %arg6[%c16, %c0_28], %19 {strides = array<i32>} : memref<32x128xf32, #tpu.memory_space<vmem>>, vector<8x128xf32>,
    %54 = vector.shape_cast %50 : vector<1x128xf32> to vector<1x128xf32>
    %55 = vector.broadcast %54 : vector<1x128xf32> to vector<8x128xf32>
    %c24 = arith.constant 24 : index
    %c0_29 = arith.constant 0 : index
    %56 = vector.load %arg6[%c24, %c0_29] : memref<32x128xf32, #tpu.memory_space<vmem>>, vector<8x128xf32>
    tpu.vector_store %arg6[%c24, %c0_29], %55 {strides = array<i32>} : memref<32x128xf32, #tpu.memory_space<vmem>>, vector<8x128xf32>,
    return
  }
  func.func @transform_0(%arg0: i32) -> (i32, i32) {
    %c0_i32 = arith.constant 0 : i32
    %c0_i32_0 = arith.constant 0 : i32
    return %c0_i32, %arg0 : i32, i32
  }
  func.func @transform_1(%arg0: i32) -> (i32, i32) {
    %c0_i32 = arith.constant 0 : i32
    %c0_i32_0 = arith.constant 0 : i32
    %c0_i32_1 = arith.constant 0 : i32
    return %c0_i32, %c0_i32_0 : i32, i32
  }
  func.func @transform_2(%arg0: i32) -> (i32, i32) {
    %c0_i32 = arith.constant 0 : i32
    %c0_i32_0 = arith.constant 0 : i32
    %c0_i32_1 = arith.constant 0 : i32
    return %c0_i32, %c0_i32_0 : i32, i32
  }
  func.func @transform_3(%arg0: i32) -> (i32, i32) {
    %c0_i32 = arith.constant 0 : i32
    %c0_i32_0 = arith.constant 0 : i32
    %c0_i32_1 = arith.constant 0 : i32
    return %c0_i32, %c0_i32_0 : i32, i32
  }
  func.func @transform_4(%arg0: i32) -> (i32, i32) {
    %c0_i32 = arith.constant 0 : i32
    %c0_i32_0 = arith.constant 0 : i32
    %c0_i32_1 = arith.constant 0 : i32
    return %c0_i32, %c0_i32_0 : i32, i32
  }
  func.func @transform_5(%arg0: i32) -> (i32, i32) {
    %c0_i32 = arith.constant 0 : i32
    %c0_i32_0 = arith.constant 0 : i32
    return %c0_i32, %arg0 : i32, i32
  }
}

</mosaic_0001>

<llo_original>
// kernel: tpu_custom_call.1
$region0: #{tpu_custom_call.1}
  #allocation0 [shape = 'u32[]', space=smem, size = 0x4, offset = 0x4, fixed_abs, tag = 'smem constant byte address 0x4 - core index']
  #allocation1 [shape = 'u32[144,128]{1,0:T(1,128)}', space=vmem, size = 0x12000, scoped, tag = 'internal scratch']
  %s0 = inlined_call_operand.vmem [shape: f32[32,128], index: 0, kind: input, shape index: {}]
  %s1 = inlined_call_operand.vmem [shape: f32[64,32], index: 1, kind: input, shape index: {}]
  %s2 = inlined_call_operand.vmem [shape: f32[64,1], index: 2, kind: input, shape index: {}]
  %s3 = inlined_call_operand.vmem [shape: f32[16,64], index: 3, kind: input, shape index: {}]
  %s4 = inlined_call_operand.vmem [shape: f32[16,1], index: 4, kind: input, shape index: {}]
  %s5 = inlined_call_operand.hbm [shape: f32[32,128], index: 5, kind: output, shape index: {}]
  %s6 = sld [smem:[#allocation0]]
  $region30: #{tpu_custom_call.1} parent=0
    _
  %s8 = ssub.s32 1, %s6
  %s9 = scalar_select 0, %s8, %s6
  $region1: #{tpu_custom_call.1} parent=0
    #allocation2 [shape = 'u8[16384]{0}', space=vmem, size = 0x4000, scoped, tag = 'output window, operand 0, single buffered']
    #allocation3 [shape = 's32[1]{0}', space=sflag, size = 0x4, scoped, tag = 'scoped memory for tpu_custom_call.1']
    %10 = vsyncpa [#allocation3], 0
    // Predicated region
    $region2: #{tpu_custom_call.1} parent=1 // pred_check
      _
    $region3: #{tpu_custom_call.1} parent=1 // pred_check_branch
      %12 = sbr.rel (0) target = $region5
    $region4: #{tpu_custom_call.1} parent=1 // pred_region
      _
    $region5: #{tpu_custom_call.1} parent=1 // pred_fallthru
      _
    // Predicated region
    $region6: #{tpu_custom_call.1} parent=1 // pred_check
      _
    $region7: #{tpu_custom_call.1} parent=1 // pred_check_branch
      %14 = sbr.rel (0) target = $region9
    $region8: #{tpu_custom_call.1} parent=1 // pred_region
      _
    $region9: #{tpu_custom_call.1} parent=1 // pred_fallthru
      _
    // Predicated region
    $region10: #{tpu_custom_call.1} parent=1 // pred_check
      _
    $region11: #{tpu_custom_call.1} parent=1 // pred_check_branch
      %16 = sbr.rel (0) target = $region13
    $region12: #{tpu_custom_call.1} parent=1 // pred_region
      _
    $region13: #{tpu_custom_call.1} parent=1 // pred_fallthru
      _
    // Predicated region
    $region14: #{tpu_custom_call.1} parent=1 // pred_check
      _
    $region15: #{tpu_custom_call.1} parent=1 // pred_check_branch
      %18 = sbr.rel (0) target = $region17
    $region16: #{tpu_custom_call.1} parent=1 // pred_region
      _
    $region17: #{tpu_custom_call.1} parent=1 // pred_fallthru
      _
    // Predicated region
    $region18: #{tpu_custom_call.1} parent=1 // pred_check
      _
    $region19: #{tpu_custom_call.1} parent=1 // pred_check_branch
      %20 = sbr.rel (0) target = $region21
    $region20: #{tpu_custom_call.1} parent=1 // pred_region
      _
    $region21: #{tpu_custom_call.1} parent=1 // pred_fallthru
      _
    %v21 = vld [vmem:[%s0] sm:$0xff]
    %v22 = vld [vmem:[%s0 + $0x8] sm:$0xff]
    %v23 = vld [vmem:[%s0 + $0x10] sm:$0xff]
    %v24 = vld [vmem:[%s0 + $0x18] sm:$0xff]
    %v25 = vld [vmem:[%s1] sm:$0xff]
    %v26 = vld [vmem:[%s1 + $0x8] sm:$0xff]
    %v27 = vld [vmem:[%s1 + $0x10] sm:$0xff]
    %v28 = vld [vmem:[%s1 + $0x18] sm:$0xff]
    %v29 = vld [vmem:[%s1 + $0x20] sm:$0xff]
    %v30 = vld [vmem:[%s1 + $0x28] sm:$0xff]
    %v31 = vld [vmem:[%s1 + $0x30] sm:$0xff]
    %v32 = vld [vmem:[%s1 + $0x38] sm:$0xff]
    %v33 = vld [vmem:[%s2] sm:$0xff]
    %v34 = vld [vmem:[%s2 + $0x8] sm:$0xff]
    %v35 = vld [vmem:[%s2 + $0x10] sm:$0xff]
    %v36 = vld [vmem:[%s2 + $0x18] sm:$0xff]
    %v37 = vld [vmem:[%s2 + $0x20] sm:$0xff]
    %v38 = vld [vmem:[%s2 + $0x28] sm:$0xff]
    %v39 = vld [vmem:[%s2 + $0x30] sm:$0xff]
    %v40 = vld [vmem:[%s2 + $0x38] sm:$0xff]
    %42 = vset.pattern.permute.xlu0 0
    %43 = vperm.xlu0 %42, %v33
    %v44 = vpop.permute.xlu0 %43
    %47 = vset.pattern.permute.xlu0 0
    %48 = vperm.xlu0 %47, %v34
    %v49 = vpop.permute.xlu0 %48
    %52 = vset.pattern.permute.xlu0 0
    %53 = vperm.xlu0 %52, %v35
    %v54 = vpop.permute.xlu0 %53
    %57 = vset.pattern.permute.xlu0 0
    %58 = vperm.xlu0 %57, %v36
    %v59 = vpop.permute.xlu0 %58
    %62 = vset.pattern.permute.xlu0 0
    %63 = vperm.xlu0 %62, %v37
    %v64 = vpop.permute.xlu0 %63
    %67 = vset.pattern.permute.xlu0 0
    %68 = vperm.xlu0 %67, %v38
    %v69 = vpop.permute.xlu0 %68
    %72 = vset.pattern.permute.xlu0 0
    %73 = vperm.xlu0 %72, %v39
    %v74 = vpop.permute.xlu0 %73
    %77 = vset.pattern.permute.xlu0 0
    %78 = vperm.xlu0 %77, %v40
    %v79 = vpop.permute.xlu0 %78
    %vm81 = vcmask 261120
    %v83 = vsel %vm81, %v25, 0
    %v86 = vsel %vm81, %v26, 0
    %v89 = vsel %vm81, %v27, 0
    %v92 = vsel %vm81, %v28, 0
    %v95 = vsel %vm81, %v29, 0
    %v98 = vsel %vm81, %v30, 0
    %v101 = vsel %vm81, %v31, 0
    %v104 = vsel %vm81, %v32, 0
    %106 = vmatprep.subr.mxu0 0.0
    %107 = vmatpush1.msra.mxu0 0.0
    %108 = vmatprep.subr.mxu0 0.0
    %109 = vmatpush1.msra.mxu0 0.0
    %110 = vmatprep.subr.mxu0 0.0
    %111 = vmatpush1.msra.mxu0 0.0
    %112 = vmatprep.subr.mxu0 0.0
    %113 = vmatpush1.msra.mxu0 0.0
    %114 = vmatprep.subr.mxu0 0.0
    %115 = vmatpush1.msra.mxu0 0.0
    %116 = vmatprep.subr.mxu0 0.0
    %117 = vmatpush1.msra.mxu0 0.0
    %118 = vmatprep.subr.mxu0 0.0
    %119 = vmatpush1.msra.mxu0 0.0
    %120 = vmatprep.subr.mxu0 0.0
    %121 = vmatpush1.msra.mxu0 0.0
    %122 = vmatprep.subr.mxu0 0.0
    %123 = vmatpush1.msra.mxu0 0.0
    %124 = vmatprep.subr.mxu0 0.0
    %125 = vmatpush1.msra.mxu0 0.0
    %126 = vmatprep.subr.mxu0 0.0
    %127 = vmatpush1.msra.mxu0 0.0
    %128 = vmatprep.subr.mxu0 0.0
    %129 = vmatpush1.msra.mxu0 0.0
    %130 = vmatprep.subr.mxu0 0.0
    %131 = vmatpush1.msra.mxu0 %v24
    %132 = vmatprep.subr.mxu0 0.0
    %133 = vmatpush1.msra.mxu0 %v23
    %134 = vmatprep.subr.mxu0 0.0
    %135 = vmatpush1.msra.mxu0 %v22
    %136 = vmatprep.subr.mxu0 0.0
    %137 = vmatpush1.msra.mxu0 %v21
    %138 = vmatprep.subr.mxu0 0.0
    %139 = vmatpush2.msra.mxu0 0.0
    %140 = vmatprep.subr.mxu0 0.0
    %141 = vmatpush2.msra.mxu0 0.0
    %142 = vmatprep.subr.mxu0 0.0
    %143 = vmatpush2.msra.mxu0 0.0
    %144 = vmatprep.subr.mxu0 0.0
    %145 = vmatpush2.msra.mxu0 0.0
    %146 = vmatprep.subr.mxu0 0.0
    %147 = vmatpush2.msra.mxu0 0.0
    %148 = vmatprep.subr.mxu0 0.0
    %149 = vmatpush2.msra.mxu0 0.0
    %150 = vmatprep.subr.mxu0 0.0
    %151 = vmatpush2.msra.mxu0 0.0
    %152 = vmatprep.subr.mxu0 0.0
    %153 = vmatpush2.msra.mxu0 0.0
    %154 = vmatprep.subr.mxu0 0.0
    %155 = vmatpush2.msra.mxu0 0.0
    %156 = vmatprep.subr.mxu0 0.0
    %157 = vmatpush2.msra.mxu0 0.0
    %158 = vmatprep.subr.mxu0 0.0
    %159 = vmatpush2.msra.mxu0 0.0
    %160 = vmatprep.subr.mxu0 0.0
    %161 = vmatpush2.msra.mxu0 0.0
    %162 = vmatprep.subr.mxu0 0.0
    %163 = vmatpush2.msra.mxu0 0.0
    %164 = vmatprep.subr.mxu0 0.0
    %165 = vmatpush2.msra.mxu0 0.0
    %166 = vmatprep.subr.mxu0 0.0
    %167 = vmatpush2.msra.mxu0 0.0
    %168 = vmatprep.subr.mxu0 0.0
    %169 = vmatpush2.msra.mxu0 0.0
    %170 = vmatprep.mubr.f32.mxu0 0.0
    %171 = vmatmul.mubr.f32.gmra.mxu0 %v83
    %v172 = vpop.f32.mrf.mxu0
    %v173 = vadd.f32 %v44, %v172
    %v174 = vpop.f32.mrf.mxu0
    %175 = vmatprep.mubr.f32.mxu0 0.0
    %176 = vmatmul.mubr.f32.gmra.mxu0 %v86
    %v177 = vpop.f32.mrf.mxu0
    %v178 = vadd.f32 %v49, %v177
    %v179 = vpop.f32.mrf.mxu0
    %180 = vmatprep.mubr.f32.mxu0 0.0
    %181 = vmatmul.mubr.f32.gmra.mxu0 %v89
    %v182 = vpop.f32.mrf.mxu0
    %v183 = vadd.f32 %v54, %v182
    %v184 = vpop.f32.mrf.mxu0
    %185 = vmatprep.mubr.f32.mxu0 0.0
    %186 = vmatmul.mubr.f32.gmra.mxu0 %v92
    %v187 = vpop.f32.mrf.mxu0
    %v188 = vadd.f32 %v59, %v187
    %v189 = vpop.f32.mrf.mxu0
    %190 = vmatprep.mubr.f32.mxu0 0.0
    %191 = vmatmul.mubr.f32.gmra.mxu0 %v95
    %v192 = vpop.f32.mrf.mxu0
    %v193 = vadd.f32 %v64, %v192
    %v194 = vpop.f32.mrf.mxu0
    %195 = vmatprep.mubr.f32.mxu0 0.0
    %196 = vmatmul.mubr.f32.gmra.mxu0 %v98
    %v197 = vpop.f32.mrf.mxu0
    %v198 = vadd.f32 %v69, %v197
    %v199 = vpop.f32.mrf.mxu0
    %200 = vmatprep.mubr.f32.mxu0 0.0
    %201 = vmatmul.mubr.f32.gmra.mxu0 %v101
    %v202 = vpop.f32.mrf.mxu0
    %v203 = vadd.f32 %v74, %v202
    %v204 = vpop.f32.mrf.mxu0
    %205 = vmatprep.mubr.f32.mxu0 0.0
    %206 = vmatmul.mubr.f32.gmra.mxu0 %v104
    %v207 = vpop.f32.mrf.mxu0
    %v208 = vadd.f32 %v79, %v207
    %v209 = vpop.f32.mrf.mxu0
    %210 = vdwg.mxu0
    %v211 = vmax.f32 %v173, 0.0
    %v212 = vmax.f32 %v178, 0.0
    %v213 = vmax.f32 %v183, 0.0
    %v214 = vmax.f32 %v188, 0.0
    %v215 = vmax.f32 %v193, 0.0
    %v216 = vmax.f32 %v198, 0.0
    %v217 = vmax.f32 %v203, 0.0
    %v218 = vmax.f32 %v208, 0.0
    %v219 = vld [vmem:[%s3] sm:$0xff]
    %v220 = vld [vmem:[%s3 + $0x8] sm:$0xff]
    %v221 = vld [vmem:[%s4] sm:$0xff]
    %v222 = vld [vmem:[%s4 + $0x8] sm:$0xff]
    %224 = vset.pattern.permute.xlu0 0
    %225 = vperm.xlu0 %224, %v221
    %v226 = vpop.permute.xlu0 %225
    %229 = vset.pattern.permute.xlu0 0
    %230 = vperm.xlu0 %229, %v222
    %v231 = vpop.permute.xlu0 %230
    %vm233 = vcmask 523264
    %v235 = vsel %vm233, %v219, 0
    %v238 = vsel %vm233, %v220, 0
    %240 = vmatprep.subr.mxu0 0.0
    %241 = vmatpush1.msra.mxu0 0.0
    %242 = vmatprep.subr.mxu0 0.0
    %243 = vmatpush1.msra.mxu0 0.0
    %244 = vmatprep.subr.mxu0 0.0
    %245 = vmatpush1.msra.mxu0 0.0
    %246 = vmatprep.subr.mxu0 0.0
    %247 = vmatpush1.msra.mxu0 0.0
    %248 = vmatprep.subr.mxu0 0.0
    %249 = vmatpush1.msra.mxu0 0.0
    %250 = vmatprep.subr.mxu0 0.0
    %251 = vmatpush1.msra.mxu0 0.0
    %252 = vmatprep.subr.mxu0 0.0
    %253 = vmatpush1.msra.mxu0 0.0
    %254 = vmatprep.subr.mxu0 0.0
    %255 = vmatpush1.msra.mxu0 0.0
    %256 = vmatprep.subr.mxu0 0.0
    %257 = vmatpush1.msra.mxu0 %v218
    %258 = vmatprep.subr.mxu0 0.0
    %259 = vmatpush1.msra.mxu0 %v217
    %260 = vmatprep.subr.mxu0 0.0
    %261 = vmatpush1.msra.mxu0 %v216
    %262 = vmatprep.subr.mxu0 0.0
    %263 = vmatpush1.msra.mxu0 %v215
    %264 = vmatprep.subr.mxu0 0.0
    %265 = vmatpush1.msra.mxu0 %v214
    %266 = vmatprep.subr.mxu0 0.0
    %267 = vmatpush1.msra.mxu0 %v213
    %268 = vmatprep.subr.mxu0 0.0
    %269 = vmatpush1.msra.mxu0 %v212
    %270 = vmatprep.subr.mxu0 0.0
    %271 = vmatpush1.msra.mxu0 %v211
    %272 = vmatprep.subr.mxu0 0.0
    %273 = vmatpush2.msra.mxu0 0.0
    %274 = vmatprep.subr.mxu0 0.0
    %275 = vmatpush2.msra.mxu0 0.0
    %276 = vmatprep.subr.mxu0 0.0
    %277 = vmatpush2.msra.mxu0 0.0
    %278 = vmatprep.subr.mxu0 0.0
    %279 = vmatpush2.msra.mxu0 0.0
    %280 = vmatprep.subr.mxu0 0.0
    %281 = vmatpush2.msra.mxu0 0.0
    %282 = vmatprep.subr.mxu0 0.0
    %283 = vmatpush2.msra.mxu0 0.0
    %284 = vmatprep.subr.mxu0 0.0
    %285 = vmatpush2.msra.mxu0 0.0
    %286 = vmatprep.subr.mxu0 0.0
    %287 = vmatpush2.msra.mxu0 0.0
    %288 = vmatprep.subr.mxu0 0.0
    %289 = vmatpush2.msra.mxu0 0.0
    %290 = vmatprep.subr.mxu0 0.0
    %291 = vmatpush2.msra.mxu0 0.0
    %292 = vmatprep.subr.mxu0 0.0
    %293 = vmatpush2.msra.mxu0 0.0
    %294 = vmatprep.subr.mxu0 0.0
    %295 = vmatpush2.msra.mxu0 0.0
    %296 = vmatprep.subr.mxu0 0.0
    %297 = vmatpush2.msra.mxu0 0.0
    %298 = vmatprep.subr.mxu0 0.0
    %299 = vmatpush2.msra.mxu0 0.0
    %300 = vmatprep.subr.mxu0 0.0
    %301 = vmatpush2.msra.mxu0 0.0
    %302 = vmatprep.subr.mxu0 0.0
    %303 = vmatpush2.msra.mxu0 0.0
    %304 = vmatprep.mubr.f32.mxu0 0.0
    %305 = vmatmul.mubr.f32.gmra.mxu0 %v235
    %v306 = vpop.f32.mrf.mxu0
    %v307 = vadd.f32 %v226, %v306
    %v308 = vpop.f32.mrf.mxu0
    %309 = vmatprep.mubr.f32.mxu0 0.0
    %310 = vmatmul.mubr.f32.gmra.mxu0 %v238
    %v311 = vpop.f32.mrf.mxu0
    %v312 = vadd.f32 %v231, %v311
    %v313 = vpop.f32.mrf.mxu0
    %314 = vdwg.mxu0
    %v315 = vmax.f32 %v312, -5.0
    %v316 = vmin.f32 %v315, 2.0
    %v317 = vmul.f32 %v316, 1.442695
    %v318 = vpow.pop %v317
    %v319 = vand.u32 2147483647, %v307
    %v320 = vmul.f32 %v319, -2.0
    %v321 = vmul.f32 %v320, 1.442695
    %v322 = vpow.pop %v321
    %v323 = vadd.f32 %v322, 1.0
    %v324 = vrcp.pop %v323
    %vm325 = vcmp.ge.f32.partialorder %v307, 0.0
    %v326 = vsel %vm325, 1.0, -1.0
    %v327 = vsub.f32 1.0, %v322
    %v328 = vmul.f32 %v326, %v327
    %v329 = vmul.f32 %v328, %v324
    %v330 = vsub.f32 0.0, %v316
    %v331 = vsub.f32 %v330, 0.9189385
    %v332 = vsub.f32 0.6931472, %v319
    %v333 = vlog2.pop %v323
    %v334 = vmul.f32 %v333, 0.6931472
    %v335 = vsub.f32 %v332, %v334
    %v336 = vmul.f32 %v335, 2.0
    %v337 = vsub.f32 %v331, %v336
    %v338 = vrot.slane %v337, 4
    %v339 = vadd.f32 %v337, %v338
    %v340 = vrot.slane %v339, 2
    %v341 = vadd.f32 %v339, %v340
    %v342 = vrot.slane %v341, 1
    %v343 = vadd.f32 %v341, %v342
    %344 = vst [vmem:[#allocation2] sm:$0xff] %v329
    %345 = vst [vmem:[#allocation2 + $0x8] sm:$0xff] %v307
    %346 = vst [vmem:[#allocation2 + $0x10] sm:$0xff] %v318
    %347 = vst [vmem:[#allocation2 + $0x18] sm:$0xff] %v343
    // Predicated region
    $region22: #{tpu_custom_call.1} parent=1 // pred_check
      _
    $region23: #{tpu_custom_call.1} parent=1 // pred_check_branch
      %349 = sbr.rel (0) target = $region25
    $region24: #{tpu_custom_call.1} parent=1 // pred_region
      %s351 = ssub.s32 512, 512
      %352 = vsyncadd [#allocation3], %s351
      %s353 = sshll.u32 [#allocation2], 4
      %s354 = int_to_ptr.vmem [resolvable:$true] %s353
      %359 = dma.vmem_to_hbm [thread:$0]  %s354, 512, %s5, [#allocation3], 128, 128, 8
    $region25: #{tpu_custom_call.1} parent=1 // pred_fallthru
      _
    // Predicated region
    $region26: #{tpu_custom_call.1} parent=1 // pred_check
      _
    $region27: #{tpu_custom_call.1} parent=1 // pred_check_branch
      %361 = sbr.rel (0) target = $region29
    $region28: #{tpu_custom_call.1} parent=1 // pred_region
      %362 = dma.done [#allocation3], 512
    $region29: #{tpu_custom_call.1} parent=1 // pred_fallthru
      _
    %363 = vsyncpa [#allocation3], 1

</llo_original>
